<compile_context>
chip_gen: v5e
topology: v5e:2x2
jax: 0.10.0
libtpu: 0.0.40
codegen_flags: <defaults>
</compile_context>

<pallas_src>
import jax
import jax.numpy as jnp
from jax import lax
from jax.experimental import pallas as pl
from jax.experimental.pallas import tpu as pltpu


KH = KW = 3          # conv kernel size
K_PAD = 128          # zero-padded contraction depth (v5e MXU depth; free to pad)
# NT matmul: contract the last dim of both operands -> output [Cout, N*H*W]
# keeps the big (lane) dim on the output's last axis.
_NT_DIMS = (((1,), (1,)), ((), ()))


def _gemm_bias_relu_kernel(p_ref, w_ref, b_ref, o_ref):
    # p_ref: [NHW, K_PAD]   bf16 im2col patches (lane-dense, K zero-padded)
    # w_ref: [Cout, K_PAD]  bf16 weights (tap-major, K zero-padded)
    # b_ref: [Cout, 1]      f32 bias
    # o_ref: [Cout, NHW]    f32 output (lane dim NHW is a multiple of 128)
    acc = lax.dot_general(w_ref[...], p_ref[...], _NT_DIMS,
                          preferred_element_type=jnp.float32)
    o_ref[...] = jnp.maximum(acc + b_ref[...], 0.0).astype(o_ref.dtype)


@jax.jit
def _conv3x3_relu_pallas(x_nchw, weight, bias):
    """Conv2d(k=3, stride=1, pad=1) + ReLU, matching PyTorch semantics.

    x_nchw : [N, Cin, H, W]    float32
    weight : [Cout, Cin, 3, 3] float32 (PyTorch layout)
    bias   : [Cout]            float32
    returns: [N, Cout, H, W]   float32
    """
    N, Cin, H, W = x_nchw.shape
    Cout = weight.shape[0]
    K = KH * KW * Cin
    assert K <= K_PAD, (K, K_PAD)
    NHW = N * H * W

    # --- wrapper-side im2col (fused into this jit; tiny, lane-dense) --------
    x_nhwc = jnp.transpose(x_nchw, (0, 2, 3, 1))                       # [N,H,W,Cin]
    xp = jnp.pad(x_nhwc, ((0, 0), (1, 1), (1, 1), (0, 0)))             # [N,H+2,W+2,Cin]
    taps = [xp[:, dy:dy + H, dx:dx + W, :]
            for dy in range(KH) for dx in range(KW)]                   # 9 x [N,H,W,Cin]
    patches = jnp.concatenate(taps, axis=-1).reshape(NHW, K)           # tap-major K
    patches = jnp.pad(patches, ((0, 0), (0, K_PAD - K))).astype(jnp.bfloat16)

    # weight [Cout,Cin,kh,kw] -> [Cout,kh,kw,Cin] -> [Cout,K] tap-major, pad K
    w_mat = jnp.transpose(weight, (0, 2, 3, 1)).reshape(Cout, K)
    w_mat = jnp.pad(w_mat, ((0, 0), (0, K_PAD - K))).astype(jnp.bfloat16)
    b_col = bias.reshape(Cout, 1).astype(jnp.float32)

    out = pl.pallas_call(
        _gemm_bias_relu_kernel,
        out_shape=jax.ShapeDtypeStruct((Cout, NHW), jnp.float32),
        grid=(1,),  # single step: whole problem fits in VMEM; no per-step overhead x N
        in_specs=[
            pl.BlockSpec((NHW, K_PAD), lambda i: (0, 0)),
            pl.BlockSpec((Cout, K_PAD), lambda i: (0, 0)),
            pl.BlockSpec((Cout, 1), lambda i: (0, 0)),
        ],
        out_specs=pl.BlockSpec((Cout, NHW), lambda i: (0, 0)),
        compiler_params=pltpu.CompilerParams(
            dimension_semantics=("arbitrary",)),
    )(patches, w_mat, b_col)

    # [Cout, N*H*W] -> [Cout, N, H, W] -> [N, Cout, H, W] (tiny XLA transpose)
    return jnp.transpose(out.reshape(Cout, N, H, W), (1, 0, 2, 3))


# --------------------------- DummyModule wrapper ----------------------------
def make_dummy_module(wrapped_model):
    """Equivalent of DummyModule(model): forward(*xs, **kw) -> model(*xs, **kw)."""
    def dummy_module(*xs, **kwargs):
        return wrapped_model(*xs, **kwargs)
    return dummy_module


if __name__ == "__main__":
    key = jax.random.PRNGKey(0)
    k_x, k_w, k_b = jax.random.split(key, 3)

    # Small shapes consistent with a conv forward: batch=2, Cin=4, 16x16 spatial.
    N, Cin, H, W, Cout = 2, 4, 16, 16, 8
    x = jax.random.normal(k_x, (N, Cin, H, W), dtype=jnp.float32)

    # Deterministic parameter init (synthetic, not a checkpoint load).
    weight = 0.1 * jax.random.normal(k_w, (Cout, Cin, 3, 3), dtype=jnp.float32)
    bias = 0.05 * jax.random.normal(k_b, (Cout,), dtype=jnp.float32)

    wrapped_model = lambda inp: _conv3x3_relu_pallas(inp, weight, bias)
    dummy_module = make_dummy_module(wrapped_model)

    out = jax.block_until_ready(dummy_module(x))
    assert out.shape == (N, Cout, H, W), out.shape

    # Loose correctness check vs. an f32 XLA reference (kernel uses bf16 operands).
    ref = lax.conv_general_dilated(
        x, weight, window_strides=(1, 1), padding=((1, 1), (1, 1)),
        dimension_numbers=("NCHW", "OIHW", "NCHW"))
    ref = jnp.maximum(ref + bias.reshape(1, Cout, 1, 1), 0.0)
    max_err = float(jnp.max(jnp.abs(out - ref)))
    assert max_err < 1e-1, max_err

    print("KERNEL_OK")
</pallas_src>

<mosaic_0001>
module attributes {stable_mosaic.version = 11 : i64} {
  func.func @_gemm_bias_relu_kernel(%arg0: i32, %arg1: memref<512x128xbf16, #tpu.memory_space<vmem>>, %arg2: memref<8x128xbf16, #tpu.memory_space<vmem>>, %arg3: memref<8x1xf32, #tpu.memory_space<vmem>>, %arg4: memref<8x512xf32, #tpu.memory_space<vmem>>) attributes {dimension_semantics = [#tpu.dimension_semantics<arbitrary>], iteration_bounds = array<i64: 1>, scalar_prefetch = 0 : i64, scratch_operands = 0 : i64, tpu.core_type = #tpu.core_type<tc>, window_params = [{pipeline_mode = #tpu.pipeline_mode<synchronous>, transform_indices = @transform_0, window_bounds = array<i64: 512, 128>}, {pipeline_mode = #tpu.pipeline_mode<synchronous>, transform_indices = @transform_1, window_bounds = array<i64: 8, 128>}, {pipeline_mode = #tpu.pipeline_mode<synchronous>, transform_indices = @transform_2, window_bounds = array<i64: 8, 1>}, {pipeline_mode = #tpu.pipeline_mode<synchronous>, transform_indices = @transform_3, window_bounds = array<i64: 8, 512>}]} {
    %c0 = arith.constant 0 : index
    %c0_0 = arith.constant 0 : index
    %0 = vector.load %arg2[%c0, %c0_0] : memref<8x128xbf16, #tpu.memory_space<vmem>>, vector<8x128xbf16>
    %c0_1 = arith.constant 0 : index
    %c0_2 = arith.constant 0 : index
    %1 = vector.load %arg1[%c0_1, %c0_2] : memref<512x128xbf16, #tpu.memory_space<vmem>>, vector<512x128xbf16>
    %cst = arith.constant dense<0.000000e+00> : vector<8x512xf32>
    %2 = tpu.matmul %0, %1, %cst {dimension_numbers = #tpu.dot_dimension_numbers<[1], [1], [0], [0], [0, 0, 1, 0], [], []>} : vector<8x128xbf16>, vector<512x128xbf16>, vector<8x512xf32> -> vector<8x512xf32>
    %c0_3 = arith.constant 0 : index
    %c0_4 = arith.constant 0 : index
    %3 = vector.load %arg3[%c0_3, %c0_4] : memref<8x1xf32, #tpu.memory_space<vmem>>, vector<8x1xf32>
    %4 = vector.broadcast %3 : vector<8x1xf32> to vector<8x512xf32>
    %5 = arith.addf %2, %4 : vector<8x512xf32>
    %cst_5 = arith.constant 0.000000e+00 : f32
    %6 = vector.broadcast %cst_5 : f32 to vector<8x512xf32>
    %7 = arith.maximumf %5, %6 : vector<8x512xf32>
    %c0_6 = arith.constant 0 : index
    %c0_7 = arith.constant 0 : index
    %8 = vector.load %arg4[%c0_6, %c0_7] : memref<8x512xf32, #tpu.memory_space<vmem>>, vector<8x512xf32>
    tpu.vector_store %arg4[%c0_6, %c0_7], %7 {strides = array<i32>} : memref<8x512xf32, #tpu.memory_space<vmem>>, vector<8x512xf32>,
    return
  }
  func.func @transform_0(%arg0: i32) -> (i32, i32) {
    %c0_i32 = arith.constant 0 : i32
    %c0_i32_0 = arith.constant 0 : i32
    %c0_i32_1 = arith.constant 0 : i32
    return %c0_i32, %c0_i32_0 : i32, i32
  }
  func.func @transform_1(%arg0: i32) -> (i32, i32) {
    %c0_i32 = arith.constant 0 : i32
    %c0_i32_0 = arith.constant 0 : i32
    %c0_i32_1 = arith.constant 0 : i32
    return %c0_i32, %c0_i32_0 : i32, i32
  }
  func.func @transform_2(%arg0: i32) -> (i32, i32) {
    %c0_i32 = arith.constant 0 : i32
    %c0_i32_0 = arith.constant 0 : i32
    %c0_i32_1 = arith.constant 0 : i32
    return %c0_i32, %c0_i32_0 : i32, i32
  }
  func.func @transform_3(%arg0: i32) -> (i32, i32) {
    %c0_i32 = arith.constant 0 : i32
    %c0_i32_0 = arith.constant 0 : i32
    %c0_i32_1 = arith.constant 0 : i32
    return %c0_i32, %c0_i32_0 : i32, i32
  }
}

</mosaic_0001>

<llo_original>
// kernel: _conv3x3_relu_pallas.1
$region0: #{_conv3x3_relu_pallas.1}
  #allocation0 [shape = 'u32[]', space=smem, size = 0x4, offset = 0x4, fixed_abs, tag = 'smem constant byte address 0x4 - core index']
  #allocation1 [shape = 'u32[72,128]{1,0:T(1,128)}', space=vmem, size = 0x9000, scoped, tag = 'internal scratch']
  %s0 = inlined_call_operand.vmem [shape: bf16[512,128], index: 0, kind: input, shape index: {}]
  %s1 = inlined_call_operand.vmem [shape: bf16[8,128], index: 1, kind: input, shape index: {}]
  %s2 = inlined_call_operand.vmem [shape: f32[8,1], index: 2, kind: input, shape index: {}]
  %s3 = inlined_call_operand.vmem [shape: f32[8,512], index: 3, kind: output, shape index: {}]
  %s4 = sld [smem:[#allocation0]]
  $region22: #{_conv3x3_relu_pallas.1} parent=0
    _
  %s6 = ssub.s32 1, %s4
  %s7 = scalar_select 0, %s6, %s4
  // Predicated region
  $region2: #{_conv3x3_relu_pallas.1} parent=0 // pred_check
    _
  $region3: #{_conv3x3_relu_pallas.1} parent=0 // pred_check_branch
    %9 = sbr.rel (0) target = $region5
  $region4: #{_conv3x3_relu_pallas.1} parent=0 // pred_region
    _
  $region5: #{_conv3x3_relu_pallas.1} parent=0 // pred_fallthru
    _
  // Predicated region
  $region6: #{_conv3x3_relu_pallas.1} parent=0 // pred_check
    _
  $region7: #{_conv3x3_relu_pallas.1} parent=0 // pred_check_branch
    %11 = sbr.rel (0) target = $region9
  $region8: #{_conv3x3_relu_pallas.1} parent=0 // pred_region
    _
  $region9: #{_conv3x3_relu_pallas.1} parent=0 // pred_fallthru
    _
  // Predicated region
  $region10: #{_conv3x3_relu_pallas.1} parent=0 // pred_check
    _
  $region11: #{_conv3x3_relu_pallas.1} parent=0 // pred_check_branch
    %13 = sbr.rel (0) target = $region13
  $region12: #{_conv3x3_relu_pallas.1} parent=0 // pred_region
    _
  $region13: #{_conv3x3_relu_pallas.1} parent=0 // pred_fallthru
    _
  %v14 = vld [vmem:[%s1] sm:$0xf]
  %v15 = vld [vmem:[%s0] sm:$0xf]
  %v16 = vld [vmem:[%s0 + $0x4] sm:$0xf]
  %v17 = vld [vmem:[%s0 + $0x8] sm:$0xf]
  %v18 = vld [vmem:[%s0 + $0xc] sm:$0xf]
  %v19 = vld [vmem:[%s0 + $0x10] sm:$0xf]
  %v20 = vld [vmem:[%s0 + $0x14] sm:$0xf]
  %v21 = vld [vmem:[%s0 + $0x18] sm:$0xf]
  %v22 = vld [vmem:[%s0 + $0x1c] sm:$0xf]
  %v23 = vld [vmem:[%s0 + $0x20] sm:$0xf]
  %v24 = vld [vmem:[%s0 + $0x24] sm:$0xf]
  %v25 = vld [vmem:[%s0 + $0x28] sm:$0xf]
  %v26 = vld [vmem:[%s0 + $0x2c] sm:$0xf]
  %v27 = vld [vmem:[%s0 + $0x30] sm:$0xf]
  %v28 = vld [vmem:[%s0 + $0x34] sm:$0xf]
  %v29 = vld [vmem:[%s0 + $0x38] sm:$0xf]
  %v30 = vld [vmem:[%s0 + $0x3c] sm:$0xf]
  %v31 = vld [vmem:[%s0 + $0x40] sm:$0xf]
  %v32 = vld [vmem:[%s0 + $0x44] sm:$0xf]
  %v33 = vld [vmem:[%s0 + $0x48] sm:$0xf]
  %v34 = vld [vmem:[%s0 + $0x4c] sm:$0xf]
  %v35 = vld [vmem:[%s0 + $0x50] sm:$0xf]
  %v36 = vld [vmem:[%s0 + $0x54] sm:$0xf]
  %v37 = vld [vmem:[%s0 + $0x58] sm:$0xf]
  %v38 = vld [vmem:[%s0 + $0x5c] sm:$0xf]
  %v39 = vld [vmem:[%s0 + $0x60] sm:$0xf]
  %v40 = vld [vmem:[%s0 + $0x64] sm:$0xf]
  %v41 = vld [vmem:[%s0 + $0x68] sm:$0xf]
  %v42 = vld [vmem:[%s0 + $0x6c] sm:$0xf]
  %v43 = vld [vmem:[%s0 + $0x70] sm:$0xf]
  %v44 = vld [vmem:[%s0 + $0x74] sm:$0xf]
  %v45 = vld [vmem:[%s0 + $0x78] sm:$0xf]
  %v46 = vld [vmem:[%s0 + $0x7c] sm:$0xf]
  %v47 = vld [vmem:[%s0 + $0x80] sm:$0xf]
  %v48 = vld [vmem:[%s0 + $0x84] sm:$0xf]
  %v49 = vld [vmem:[%s0 + $0x88] sm:$0xf]
  %v50 = vld [vmem:[%s0 + $0x8c] sm:$0xf]
  %v51 = vld [vmem:[%s0 + $0x90] sm:$0xf]
  %v52 = vld [vmem:[%s0 + $0x94] sm:$0xf]
  %v53 = vld [vmem:[%s0 + $0x98] sm:$0xf]
  %v54 = vld [vmem:[%s0 + $0x9c] sm:$0xf]
  %v55 = vld [vmem:[%s0 + $0xa0] sm:$0xf]
  %v56 = vld [vmem:[%s0 + $0xa4] sm:$0xf]
  %v57 = vld [vmem:[%s0 + $0xa8] sm:$0xf]
  %v58 = vld [vmem:[%s0 + $0xac] sm:$0xf]
  %v59 = vld [vmem:[%s0 + $0xb0] sm:$0xf]
  %v60 = vld [vmem:[%s0 + $0xb4] sm:$0xf]
  %v61 = vld [vmem:[%s0 + $0xb8] sm:$0xf]
  %v62 = vld [vmem:[%s0 + $0xbc] sm:$0xf]
  %v63 = vld [vmem:[%s0 + $0xc0] sm:$0xf]
  %v64 = vld [vmem:[%s0 + $0xc4] sm:$0xf]
  %v65 = vld [vmem:[%s0 + $0xc8] sm:$0xf]
  %v66 = vld [vmem:[%s0 + $0xcc] sm:$0xf]
  %v67 = vld [vmem:[%s0 + $0xd0] sm:$0xf]
  %v68 = vld [vmem:[%s0 + $0xd4] sm:$0xf]
  %v69 = vld [vmem:[%s0 + $0xd8] sm:$0xf]
  %v70 = vld [vmem:[%s0 + $0xdc] sm:$0xf]
  %v71 = vld [vmem:[%s0 + $0xe0] sm:$0xf]
  %v72 = vld [vmem:[%s0 + $0xe4] sm:$0xf]
  %v73 = vld [vmem:[%s0 + $0xe8] sm:$0xf]
  %v74 = vld [vmem:[%s0 + $0xec] sm:$0xf]
  %v75 = vld [vmem:[%s0 + $0xf0] sm:$0xf]
  %v76 = vld [vmem:[%s0 + $0xf4] sm:$0xf]
  %v77 = vld [vmem:[%s0 + $0xf8] sm:$0xf]
  %v78 = vld [vmem:[%s0 + $0xfc] sm:$0xf]
  %v79 = vld [vmem:[%s2] sm:$0xff]
  %81 = vset.pattern.permute.xlu0 0
  %82 = vperm.xlu0 %81, %v79
  %v83 = vpop.permute.xlu0 %82
  %v149 = vunpack.c.l.b16 %v15
  %v150 = vunpack.c.l.b16 %v16
  %v151 = vunpack.c.l.b16 %v17
  %v152 = vunpack.c.l.b16 %v18
  %v153 = vunpack.c.l.b16 %v19
  %v154 = vunpack.c.l.b16 %v20
  %v155 = vunpack.c.l.b16 %v21
  %v156 = vunpack.c.l.b16 %v22
  %v157 = vunpack.c.l.b16 %v23
  %v158 = vunpack.c.l.b16 %v24
  %v159 = vunpack.c.l.b16 %v25
  %v160 = vunpack.c.l.b16 %v26
  %v161 = vunpack.c.l.b16 %v27
  %v162 = vunpack.c.l.b16 %v28
  %v163 = vunpack.c.l.b16 %v29
  %v164 = vunpack.c.l.b16 %v30
  %v165 = vunpack.c.l.b16 %v31
  %v166 = vunpack.c.l.b16 %v32
  %v167 = vunpack.c.l.b16 %v33
  %v168 = vunpack.c.l.b16 %v34
  %v169 = vunpack.c.l.b16 %v35
  %v170 = vunpack.c.l.b16 %v36
  %v171 = vunpack.c.l.b16 %v37
  %v172 = vunpack.c.l.b16 %v38
  %v173 = vunpack.c.l.b16 %v39
  %v174 = vunpack.c.l.b16 %v40
  %v175 = vunpack.c.l.b16 %v41
  %v176 = vunpack.c.l.b16 %v42
  %v177 = vunpack.c.l.b16 %v43
  %v178 = vunpack.c.l.b16 %v44
  %v179 = vunpack.c.l.b16 %v45
  %v180 = vunpack.c.l.b16 %v46
  %v181 = vunpack.c.l.b16 %v47
  %v182 = vunpack.c.l.b16 %v48
  %v183 = vunpack.c.l.b16 %v49
  %v184 = vunpack.c.l.b16 %v50
  %v185 = vunpack.c.l.b16 %v51
  %v186 = vunpack.c.l.b16 %v52
  %v187 = vunpack.c.l.b16 %v53
  %v188 = vunpack.c.l.b16 %v54
  %v189 = vunpack.c.l.b16 %v55
  %v190 = vunpack.c.l.b16 %v56
  %v191 = vunpack.c.l.b16 %v57
  %v192 = vunpack.c.l.b16 %v58
  %v193 = vunpack.c.l.b16 %v59
  %v194 = vunpack.c.l.b16 %v60
  %v195 = vunpack.c.l.b16 %v61
  %v196 = vunpack.c.l.b16 %v62
  %v197 = vunpack.c.l.b16 %v63
  %v198 = vunpack.c.l.b16 %v64
  %v199 = vunpack.c.l.b16 %v65
  %v200 = vunpack.c.l.b16 %v66
  %v201 = vunpack.c.l.b16 %v67
  %v202 = vunpack.c.l.b16 %v68
  %v203 = vunpack.c.l.b16 %v69
  %v204 = vunpack.c.l.b16 %v70
  %v205 = vunpack.c.l.b16 %v71
  %v206 = vunpack.c.l.b16 %v72
  %v207 = vunpack.c.l.b16 %v73
  %v208 = vunpack.c.l.b16 %v74
  %v209 = vunpack.c.l.b16 %v75
  %v210 = vunpack.c.l.b16 %v76
  %v211 = vunpack.c.l.b16 %v77
  %v212 = vunpack.c.l.b16 %v78
  %v213 = vpack.c.b16 %v150, %v149
  %v214 = vpack.c.b16 %v152, %v151
  %v215 = vpack.c.b16 %v154, %v153
  %v216 = vpack.c.b16 %v156, %v155
  %v217 = vpack.c.b16 %v158, %v157
  %v218 = vpack.c.b16 %v160, %v159
  %v219 = vpack.c.b16 %v162, %v161
  %v220 = vpack.c.b16 %v164, %v163
  %v221 = vpack.c.b16 %v166, %v165
  %v222 = vpack.c.b16 %v168, %v167
  %v223 = vpack.c.b16 %v170, %v169
  %v224 = vpack.c.b16 %v172, %v171
  %v225 = vpack.c.b16 %v174, %v173
  %v226 = vpack.c.b16 %v176, %v175
  %v227 = vpack.c.b16 %v178, %v177
  %v228 = vpack.c.b16 %v180, %v179
  %v229 = vpack.c.b16 %v182, %v181
  %v230 = vpack.c.b16 %v184, %v183
  %v231 = vpack.c.b16 %v186, %v185
  %v232 = vpack.c.b16 %v188, %v187
  %v233 = vpack.c.b16 %v190, %v189
  %v234 = vpack.c.b16 %v192, %v191
  %v235 = vpack.c.b16 %v194, %v193
  %v236 = vpack.c.b16 %v196, %v195
  %v237 = vpack.c.b16 %v198, %v197
  %v238 = vpack.c.b16 %v200, %v199
  %v239 = vpack.c.b16 %v202, %v201
  %v240 = vpack.c.b16 %v204, %v203
  %v241 = vpack.c.b16 %v206, %v205
  %v242 = vpack.c.b16 %v208, %v207
  %v243 = vpack.c.b16 %v210, %v209
  %v244 = vpack.c.b16 %v212, %v211
  %277 = vmatpush.bf16.xpose.msra.mxu0 %v220
  %278 = vmatpush.bf16.xpose.msra.mxu0 %v219
  %279 = vmatpush.bf16.xpose.msra.mxu0 %v218
  %280 = vmatpush.bf16.xpose.msra.mxu0 %v217
  %281 = vmatpush.bf16.xpose.msra.mxu0 %v216
  %282 = vmatpush.bf16.xpose.msra.mxu0 %v215
  %283 = vmatpush.bf16.xpose.msra.mxu0 %v214
  %284 = vmatpush.bf16.xpose.msra.mxu0 %v213
  %285 = vmatmul.bf16.gmra.mxu0 %v14
  %v286 = vpop.f32.mrf.mxu0
  %v287 = vadd.f32 %v83, %v286
  %v288 = vpop.f32.mrf.mxu0
  %289 = vdwg.mxu0
  %290 = vmatpush.bf16.xpose.msra.mxu0 %v228
  %291 = vmatpush.bf16.xpose.msra.mxu0 %v227
  %292 = vmatpush.bf16.xpose.msra.mxu0 %v226
  %293 = vmatpush.bf16.xpose.msra.mxu0 %v225
  %294 = vmatpush.bf16.xpose.msra.mxu0 %v224
  %295 = vmatpush.bf16.xpose.msra.mxu0 %v223
  %296 = vmatpush.bf16.xpose.msra.mxu0 %v222
  %297 = vmatpush.bf16.xpose.msra.mxu0 %v221
  %298 = vmatmul.bf16.gmra.mxu0 %v14
  %v299 = vpop.f32.mrf.mxu0
  %v300 = vadd.f32 %v83, %v299
  %v301 = vpop.f32.mrf.mxu0
  %302 = vdwg.mxu0
  %303 = vmatpush.bf16.xpose.msra.mxu0 %v236
  %304 = vmatpush.bf16.xpose.msra.mxu0 %v235
  %305 = vmatpush.bf16.xpose.msra.mxu0 %v234
  %306 = vmatpush.bf16.xpose.msra.mxu0 %v233
  %307 = vmatpush.bf16.xpose.msra.mxu0 %v232
  %308 = vmatpush.bf16.xpose.msra.mxu0 %v231
  %309 = vmatpush.bf16.xpose.msra.mxu0 %v230
  %310 = vmatpush.bf16.xpose.msra.mxu0 %v229
  %311 = vmatmul.bf16.gmra.mxu0 %v14
  %v312 = vpop.f32.mrf.mxu0
  %v313 = vadd.f32 %v83, %v312
  %v314 = vpop.f32.mrf.mxu0
  %315 = vdwg.mxu0
  %316 = vmatpush.bf16.xpose.msra.mxu0 %v244
  %317 = vmatpush.bf16.xpose.msra.mxu0 %v243
  %318 = vmatpush.bf16.xpose.msra.mxu0 %v242
  %319 = vmatpush.bf16.xpose.msra.mxu0 %v241
  %320 = vmatpush.bf16.xpose.msra.mxu0 %v240
  %321 = vmatpush.bf16.xpose.msra.mxu0 %v239
  %322 = vmatpush.bf16.xpose.msra.mxu0 %v238
  %323 = vmatpush.bf16.xpose.msra.mxu0 %v237
  %324 = vmatmul.bf16.gmra.mxu0 %v14
  %v325 = vpop.f32.mrf.mxu0
  %v326 = vadd.f32 %v83, %v325
  %v327 = vpop.f32.mrf.mxu0
  %328 = vdwg.mxu0
  %v329 = vmax.f32 %v287, 0.0
  %v330 = vmax.f32 %v300, 0.0
  %v331 = vmax.f32 %v313, 0.0
  %v332 = vmax.f32 %v326, 0.0
  %333 = vst [vmem:[%s3] sm:$0xff] %v329
  %334 = vst [vmem:[%s3 + $0x8] sm:$0xff] %v330
  %335 = vst [vmem:[%s3 + $0x10] sm:$0xff] %v331
  %336 = vst [vmem:[%s3 + $0x18] sm:$0xff] %v332
  // Predicated region
  $region14: #{_conv3x3_relu_pallas.1} parent=0 // pred_check
    _
  $region15: #{_conv3x3_relu_pallas.1} parent=0 // pred_check_branch
    %338 = sbr.rel (0) target = $region17
  $region16: #{_conv3x3_relu_pallas.1} parent=0 // pred_region
    _
  $region17: #{_conv3x3_relu_pallas.1} parent=0 // pred_fallthru
    _
  // Predicated region
  $region18: #{_conv3x3_relu_pallas.1} parent=0 // pred_check
    _
  $region19: #{_conv3x3_relu_pallas.1} parent=0 // pred_check_branch
    %340 = sbr.rel (0) target = $region21
  $region20: #{_conv3x3_relu_pallas.1} parent=0 // pred_region
    _
  $region21: #{_conv3x3_relu_pallas.1} parent=0 // pred_fallthru
    _

</llo_original>
